<compile_context>
chip_gen: v5e
topology: v5e:2x2
jax: 0.10.0
libtpu: 0.0.40
codegen_flags: <defaults>
</compile_context>

<pallas_src>
import math

import jax
import jax.numpy as jnp
from jax.experimental import pallas as pl
from jax.experimental.pallas import tpu as pltpu

K = 3          # kernel_size
S = 3          # stride (MaxPool2d default: stride = kernel_size)
_LANES = 128
_VMEM_IN_BLOCK_BUDGET = 6 * 1024 * 1024  # bytes for one (single-buffer) input block


def _round_up(a: int, b: int) -> int:
    return ((a + b - 1) // b) * b


def _ceil_mode_out(dim: int, k: int, s: int) -> int:
    """PyTorch MaxPool2d output size with ceil_mode=True, padding=0."""
    out = math.ceil((dim - k) / s) + 1
    if (out - 1) * s >= dim:  # last window must start inside the input
        out -= 1
    return out


def _pad_value(dtype):
    """Identity element for max: -inf for floats, dtype-min for ints."""
    dtype = jnp.dtype(dtype)
    if jnp.issubdtype(dtype, jnp.floating):
        return jnp.array(-jnp.inf, dtype=dtype)
    return jnp.array(jnp.iinfo(dtype).min, dtype=dtype)


def _pick_tiles(oh: int, ow: int, nc_pad: int, itemsize: int):
    """Choose (rows-per-step rt, lane-tile nct) under a VMEM budget.

    The input block is (rt*K, ow, K, nct); its minor (K, nct) tile pads the
    K=3 sublanes up to 8, so the budget includes that 8/K inflation.
    """
    per_row = K * ow * 8 * itemsize  # bytes per lane for one output row's input
    nct_max = max(_LANES, (_VMEM_IN_BLOCK_BUDGET // per_row) // _LANES * _LANES)
    nct = min(nc_pad, nct_max)
    rt = max(1, min(oh, _VMEM_IN_BLOCK_BUDGET // (per_row * nct)))
    return rt, nct


def _maxpool_kernel(x_ref, o_ref):
    # x_ref: (rt*K, ow, K, nct) -- pooling-window extents are explicit dims,
    #                              already -inf padded for ceil-mode edges.
    # o_ref: (rt,   ow,    nct)
    rt, ow, nct = o_ref.shape
    m = jnp.max(x_ref[...], axis=2)        # reduce window columns (3 sublanes, XLU)
    m = m.reshape(rt, K, ow, nct)          # leading-dims-only reshape: free
    o_ref[...] = jnp.max(m, axis=1)        # reduce window rows (elementwise, VPU)


def _maxpool2d_ceil_pallas(x: jax.Array) -> jax.Array:
    N, C, H, W = x.shape
    oh = _ceil_mode_out(H, K, S)
    ow = _ceil_mode_out(W, K, S)
    NC = N * C
    itemsize = jnp.dtype(x.dtype).itemsize

    nc_pad = _round_up(NC, _LANES)                  # lane-dense last dim
    rt, nct = _pick_tiles(oh, ow, nc_pad, itemsize)
    nc_pad = _round_up(nc_pad, nct)                 # lane tiles divide evenly
    oh_pad = _round_up(oh, rt)                      # row tiles divide evenly
    Hp = oh_pad * K
    Wp = ow * K

    pad = _pad_value(x.dtype)

    # One fused XLA pass: NCHW -> (H, W, N*C) laid into the padded buffer.
    x_hwc = jnp.transpose(x.reshape(NC, H, W), (1, 2, 0))
    xp = jnp.full((Hp, Wp, nc_pad), pad, dtype=x.dtype)
    xp = xp.at[:H, :W, :NC].set(x_hwc)
    # Free (bitcast) reshape: expose the column-window extent as its own dim.
    xw = xp.reshape(Hp, ow, K, nc_pad)

    grid = (oh_pad // rt, nc_pad // nct)
    out = pl.pallas_call(
        _maxpool_kernel,
        out_shape=jax.ShapeDtypeStruct((oh_pad, ow, nc_pad), x.dtype),
        grid=grid,
        in_specs=[pl.BlockSpec((rt * K, ow, K, nct), lambda i, c: (i, 0, 0, c))],
        out_specs=pl.BlockSpec((rt, ow, nct), lambda i, c: (i, 0, c)),
        compiler_params=pltpu.CompilerParams(
            dimension_semantics=("parallel", "parallel"),
            vmem_limit_bytes=32 * 1024 * 1024,
        ),
    )(xw)

    # Single output pass: drop padding, back to NCHW.
    out = out[:oh, :, :NC]
    return jnp.transpose(out, (2, 0, 1)).reshape(N, C, oh, ow)


def _reference(x: jax.Array) -> jax.Array:
    """Pure-JAX/XLA reference (also the small-input fast path)."""
    N, C, H, W = x.shape
    oh = _ceil_mode_out(H, K, S)
    ow = _ceil_mode_out(W, K, S)
    pad = _pad_value(x.dtype)
    xp = jnp.full((N, C, oh * K, ow * K), pad, dtype=x.dtype)
    xp = xp.at[:, :, :H, :W].set(x)
    return jnp.max(xp.reshape(N, C, oh, K, ow, K), axis=(3, 5))


def maxpool2d_ceil(x: jax.Array, *, min_pallas_bytes: int = 1 << 20) -> jax.Array:
    """MaxPool2d(kernel_size=3, stride=3, ceil_mode=True) on NCHW input."""
    if x.size * jnp.dtype(x.dtype).itemsize < min_pallas_bytes:
        # Tiny inputs: one fused XLA reduce beats pallas_call fixed cost.
        return _reference(x)
    return _maxpool2d_ceil_pallas(x)


if __name__ == "__main__":
    key = jax.random.PRNGKey(0)
    x = jax.random.normal(key, (2, 4, 16, 16), dtype=jnp.float32)

    # Force the Pallas path (default dispatch would send this tiny input to
    # the fused-XLA reference).
    y = jax.block_until_ready(maxpool2d_ceil(x, min_pallas_bytes=0))

    y_ref = _reference(x)
    assert y.shape == (2, 4, 6, 6), y.shape
    assert jnp.allclose(y, y_ref), "mismatch vs reference"

    print("KERNEL_OK")
</pallas_src>

<mosaic_0001>
module attributes {stable_mosaic.version = 11 : i64} {
  func.func @_maxpool_kernel(%arg0: i32, %arg1: i32, %arg2: memref<18x6x3x128xf32, #tpu.memory_space<vmem>>, %arg3: memref<6x6x128xf32, #tpu.memory_space<vmem>>) attributes {dimension_semantics = [#tpu.dimension_semantics<parallel>, #tpu.dimension_semantics<parallel>], iteration_bounds = array<i64: 1, 1>, scalar_prefetch = 0 : i64, scratch_operands = 0 : i64, tpu.core_type = #tpu.core_type<tc>, window_params = [{transform_indices = @transform_0, window_bounds = array<i64: 18, 6, 3, 128>}, {transform_indices = @transform_1, window_bounds = array<i64: 6, 6, 128>}]} {
    %c0 = arith.constant 0 : index
    %c0_0 = arith.constant 0 : index
    %c0_1 = arith.constant 0 : index
    %c0_2 = arith.constant 0 : index
    %0 = vector.load %arg2[%c0, %c0_0, %c0_1, %c0_2] : memref<18x6x3x128xf32, #tpu.memory_space<vmem>>, vector<18x6x3x128xf32>
    %cst = arith.constant dense<0xFF800000> : vector<18x6x128xf32>
    %1 = vector.multi_reduction <maximumf>, %0, %cst [2] : vector<18x6x3x128xf32> to vector<18x6x128xf32>
    %2 = vector.shape_cast %1 : vector<18x6x128xf32> to vector<6x3x6x128xf32>
    %cst_3 = arith.constant dense<0xFF800000> : vector<6x6x128xf32>
    %3 = vector.multi_reduction <maximumf>, %2, %cst_3 [1] : vector<6x3x6x128xf32> to vector<6x6x128xf32>
    %c0_4 = arith.constant 0 : index
    %c0_5 = arith.constant 0 : index
    %c0_6 = arith.constant 0 : index
    %4 = vector.load %arg3[%c0_4, %c0_5, %c0_6] : memref<6x6x128xf32, #tpu.memory_space<vmem>>, vector<6x6x128xf32>
    tpu.vector_store %arg3[%c0_4, %c0_5, %c0_6], %3 {strides = array<i32>} : memref<6x6x128xf32, #tpu.memory_space<vmem>>, vector<6x6x128xf32>,
    return
  }
  func.func @transform_0(%arg0: i32, %arg1: i32) -> (i32, i32, i32, i32) {
    %c0_i32 = arith.constant 0 : i32
    %c0_i32_0 = arith.constant 0 : i32
    %c0_i32_1 = arith.constant 0 : i32
    return %arg0, %c0_i32, %c0_i32_0, %arg1 : i32, i32, i32, i32
  }
  func.func @transform_1(%arg0: i32, %arg1: i32) -> (i32, i32, i32) {
    %c0_i32 = arith.constant 0 : i32
    %c0_i32_0 = arith.constant 0 : i32
    return %arg0, %c0_i32, %arg1 : i32, i32, i32
  }
}

</mosaic_0001>

<llo_original>
// kernel: tpu_custom_call.1
$region0: #{tpu_custom_call.1}
  #allocation0 [shape = 'u32[]', space=smem, size = 0x4, offset = 0x4, fixed_abs, tag = 'smem constant byte address 0x4 - core index']
  #allocation1 [shape = 'u32[72,128]{1,0:T(1,128)}', space=vmem, size = 0x9000, scoped, tag = 'internal scratch']
  %s0 = inlined_call_operand.hbm [shape: f32[18,6,3,128], index: 0, kind: input, shape index: {}]
  %s1 = inlined_call_operand.hbm [shape: f32[6,6,128], index: 1, kind: output, shape index: {}]
  %s2 = sld [smem:[#allocation0]]
  $region18: #{tpu_custom_call.1} parent=0
    _
  %s4 = ssub.s32 1, %s2
  %s5 = scalar_select 0, %s4, %s2
  $region1: #{tpu_custom_call.1} parent=0
    #allocation2 [shape = 'u8[221184]{0}', space=vmem, size = 0x36000, scoped, tag = 'input window, operand 0, single buffered']
    #allocation3 [shape = 's32[1]{0}', space=sflag, size = 0x4, scoped, tag = 'scoped memory for tpu_custom_call.1']
    #allocation4 [shape = 's32[1]{0}', space=sflag, size = 0x4, scoped, tag = 'scoped memory for tpu_custom_call.1']
    #allocation5 [shape = 'u8[24576]{0}', space=vmem, size = 0x6000, scoped, tag = 'output window, operand 0, single buffered']
    %6 = vsyncpa [#allocation3], 0
    %7 = vsyncpa [#allocation4], 0
    // Predicated region
    $region2: #{tpu_custom_call.1} parent=1 // pred_check
      _
    $region3: #{tpu_custom_call.1} parent=1 // pred_check_branch
      %9 = sbr.rel (0) target = $region5
    $region4: #{tpu_custom_call.1} parent=1 // pred_region
      %11 = vsyncadd [#allocation3], 0
      %s12 = sshll.u32 %s0, 4
      %s13 = int_to_ptr.hbm [resolvable:$true] %s12
      %s14 = sshll.u32 [#allocation2], 4
      %s15 = int_to_ptr.vmem [resolvable:$true] %s14
      %20 = dma.hbm_to_vmem [thread:$0]  %s13, 6912, %s15, [#allocation3], 64, 64, 4
    $region5: #{tpu_custom_call.1} parent=1 // pred_fallthru
      _
    // Predicated region
    $region6: #{tpu_custom_call.1} parent=1 // pred_check
      _
    $region7: #{tpu_custom_call.1} parent=1 // pred_check_branch
      %22 = sbr.rel (0) target = $region9
    $region8: #{tpu_custom_call.1} parent=1 // pred_region
      %24 = dma.done [#allocation3], 6912
    $region9: #{tpu_custom_call.1} parent=1 // pred_fallthru
      _
    %v25 = vld [vmem:[#allocation2] sm:$0x7]
    %v26 = vld [vmem:[#allocation2 + $0x4] sm:$0x7]
    %v27 = vld [vmem:[#allocation2 + $0x8] sm:$0x7]
    %v28 = vld [vmem:[#allocation2 + $0xc] sm:$0x7]
    %v29 = vld [vmem:[#allocation2 + $0x10] sm:$0x7]
    %v30 = vld [vmem:[#allocation2 + $0x14] sm:$0x7]
    %v31 = vld [vmem:[#allocation2 + $0x18] sm:$0x7]
    %v32 = vld [vmem:[#allocation2 + $0x1c] sm:$0x7]
    %v33 = vld [vmem:[#allocation2 + $0x20] sm:$0x7]
    %v34 = vld [vmem:[#allocation2 + $0x24] sm:$0x7]
    %v35 = vld [vmem:[#allocation2 + $0x28] sm:$0x7]
    %v36 = vld [vmem:[#allocation2 + $0x2c] sm:$0x7]
    %v37 = vld [vmem:[#allocation2 + $0x30] sm:$0x7]
    %v38 = vld [vmem:[#allocation2 + $0x34] sm:$0x7]
    %v39 = vld [vmem:[#allocation2 + $0x38] sm:$0x7]
    %v40 = vld [vmem:[#allocation2 + $0x3c] sm:$0x7]
    %v41 = vld [vmem:[#allocation2 + $0x40] sm:$0x7]
    %v42 = vld [vmem:[#allocation2 + $0x44] sm:$0x7]
    %v43 = vld [vmem:[#allocation2 + $0x48] sm:$0x7]
    %v44 = vld [vmem:[#allocation2 + $0x4c] sm:$0x7]
    %v45 = vld [vmem:[#allocation2 + $0x50] sm:$0x7]
    %v46 = vld [vmem:[#allocation2 + $0x54] sm:$0x7]
    %v47 = vld [vmem:[#allocation2 + $0x58] sm:$0x7]
    %v48 = vld [vmem:[#allocation2 + $0x5c] sm:$0x7]
    %v49 = vld [vmem:[#allocation2 + $0x60] sm:$0x7]
    %v50 = vld [vmem:[#allocation2 + $0x64] sm:$0x7]
    %v51 = vld [vmem:[#allocation2 + $0x68] sm:$0x7]
    %v52 = vld [vmem:[#allocation2 + $0x6c] sm:$0x7]
    %v53 = vld [vmem:[#allocation2 + $0x70] sm:$0x7]
    %v54 = vld [vmem:[#allocation2 + $0x74] sm:$0x7]
    %v55 = vld [vmem:[#allocation2 + $0x78] sm:$0x7]
    %v56 = vld [vmem:[#allocation2 + $0x7c] sm:$0x7]
    %v57 = vld [vmem:[#allocation2 + $0x80] sm:$0x7]
    %v58 = vld [vmem:[#allocation2 + $0x84] sm:$0x7]
    %v59 = vld [vmem:[#allocation2 + $0x88] sm:$0x7]
    %v60 = vld [vmem:[#allocation2 + $0x8c] sm:$0x7]
    %v61 = vld [vmem:[#allocation2 + $0x90] sm:$0x7]
    %v62 = vld [vmem:[#allocation2 + $0x94] sm:$0x7]
    %v63 = vld [vmem:[#allocation2 + $0x98] sm:$0x7]
    %v64 = vld [vmem:[#allocation2 + $0x9c] sm:$0x7]
    %v65 = vld [vmem:[#allocation2 + $0xa0] sm:$0x7]
    %v66 = vld [vmem:[#allocation2 + $0xa4] sm:$0x7]
    %v67 = vld [vmem:[#allocation2 + $0xa8] sm:$0x7]
    %v68 = vld [vmem:[#allocation2 + $0xac] sm:$0x7]
    %v69 = vld [vmem:[#allocation2 + $0xb0] sm:$0x7]
    %v70 = vld [vmem:[#allocation2 + $0xb4] sm:$0x7]
    %v71 = vld [vmem:[#allocation2 + $0xb8] sm:$0x7]
    %v72 = vld [vmem:[#allocation2 + $0xbc] sm:$0x7]
    %v73 = vld [vmem:[#allocation2 + $0xc0] sm:$0x7]
    %v74 = vld [vmem:[#allocation2 + $0xc4] sm:$0x7]
    %v75 = vld [vmem:[#allocation2 + $0xc8] sm:$0x7]
    %v76 = vld [vmem:[#allocation2 + $0xcc] sm:$0x7]
    %v77 = vld [vmem:[#allocation2 + $0xd0] sm:$0x7]
    %v78 = vld [vmem:[#allocation2 + $0xd4] sm:$0x7]
    %v79 = vld [vmem:[#allocation2 + $0xd8] sm:$0x7]
    %v80 = vld [vmem:[#allocation2 + $0xdc] sm:$0x7]
    %v81 = vld [vmem:[#allocation2 + $0xe0] sm:$0x7]
    %v82 = vld [vmem:[#allocation2 + $0xe4] sm:$0x7]
    %v83 = vld [vmem:[#allocation2 + $0xe8] sm:$0x7]
    %v84 = vld [vmem:[#allocation2 + $0xec] sm:$0x7]
    %v85 = vld [vmem:[#allocation2 + $0xf0] sm:$0x7]
    %v86 = vld [vmem:[#allocation2 + $0xf4] sm:$0x7]
    %v87 = vld [vmem:[#allocation2 + $0xf8] sm:$0x7]
    %v88 = vld [vmem:[#allocation2 + $0xfc] sm:$0x7]
    %v89 = vld [vmem:[#allocation2 + $0x100] sm:$0x7]
    %v90 = vld [vmem:[#allocation2 + $0x104] sm:$0x7]
    %v91 = vld [vmem:[#allocation2 + $0x108] sm:$0x7]
    %v92 = vld [vmem:[#allocation2 + $0x10c] sm:$0x7]
    %v93 = vld [vmem:[#allocation2 + $0x110] sm:$0x7]
    %v94 = vld [vmem:[#allocation2 + $0x114] sm:$0x7]
    %v95 = vld [vmem:[#allocation2 + $0x118] sm:$0x7]
    %v96 = vld [vmem:[#allocation2 + $0x11c] sm:$0x7]
    %v97 = vld [vmem:[#allocation2 + $0x120] sm:$0x7]
    %v98 = vld [vmem:[#allocation2 + $0x124] sm:$0x7]
    %v99 = vld [vmem:[#allocation2 + $0x128] sm:$0x7]
    %v100 = vld [vmem:[#allocation2 + $0x12c] sm:$0x7]
    %v101 = vld [vmem:[#allocation2 + $0x130] sm:$0x7]
    %v102 = vld [vmem:[#allocation2 + $0x134] sm:$0x7]
    %v103 = vld [vmem:[#allocation2 + $0x138] sm:$0x7]
    %v104 = vld [vmem:[#allocation2 + $0x13c] sm:$0x7]
    %v105 = vld [vmem:[#allocation2 + $0x140] sm:$0x7]
    %v106 = vld [vmem:[#allocation2 + $0x144] sm:$0x7]
    %v107 = vld [vmem:[#allocation2 + $0x148] sm:$0x7]
    %v108 = vld [vmem:[#allocation2 + $0x14c] sm:$0x7]
    %v109 = vld [vmem:[#allocation2 + $0x150] sm:$0x7]
    %v110 = vld [vmem:[#allocation2 + $0x154] sm:$0x7]
    %v111 = vld [vmem:[#allocation2 + $0x158] sm:$0x7]
    %v112 = vld [vmem:[#allocation2 + $0x15c] sm:$0x7]
    %v113 = vld [vmem:[#allocation2 + $0x160] sm:$0x7]
    %v114 = vld [vmem:[#allocation2 + $0x164] sm:$0x7]
    %v115 = vld [vmem:[#allocation2 + $0x168] sm:$0x7]
    %v116 = vld [vmem:[#allocation2 + $0x16c] sm:$0x7]
    %v117 = vld [vmem:[#allocation2 + $0x170] sm:$0x7]
    %v118 = vld [vmem:[#allocation2 + $0x174] sm:$0x7]
    %v119 = vld [vmem:[#allocation2 + $0x178] sm:$0x7]
    %v120 = vld [vmem:[#allocation2 + $0x17c] sm:$0x7]
    %v121 = vld [vmem:[#allocation2 + $0x180] sm:$0x7]
    %v122 = vld [vmem:[#allocation2 + $0x184] sm:$0x7]
    %v123 = vld [vmem:[#allocation2 + $0x188] sm:$0x7]
    %v124 = vld [vmem:[#allocation2 + $0x18c] sm:$0x7]
    %v125 = vld [vmem:[#allocation2 + $0x190] sm:$0x7]
    %v126 = vld [vmem:[#allocation2 + $0x194] sm:$0x7]
    %v127 = vld [vmem:[#allocation2 + $0x198] sm:$0x7]
    %v128 = vld [vmem:[#allocation2 + $0x19c] sm:$0x7]
    %v129 = vld [vmem:[#allocation2 + $0x1a0] sm:$0x7]
    %v130 = vld [vmem:[#allocation2 + $0x1a4] sm:$0x7]
    %v131 = vld [vmem:[#allocation2 + $0x1a8] sm:$0x7]
    %v132 = vld [vmem:[#allocation2 + $0x1ac] sm:$0x7]
    %vm133 = vcmask 1042432
    %v134 = vsel %vm133, %v25, -inf
    %v135 = vrot.slane %v134, 4
    %v136 = vmax.f32 %v134, %v135
    %v137 = vrot.slane %v136, 2
    %v138 = vmax.f32 %v136, %v137
    %v139 = vrot.slane %v138, 1
    %v140 = vmax.f32 %v138, %v139
    %v141 = vsel %vm133, %v26, -inf
    %v142 = vrot.slane %v141, 4
    %v143 = vmax.f32 %v141, %v142
    %v144 = vrot.slane %v143, 2
    %v145 = vmax.f32 %v143, %v144
    %v146 = vrot.slane %v145, 1
    %v147 = vmax.f32 %v145, %v146
    %v148 = vsel %vm133, %v27, -inf
    %v149 = vrot.slane %v148, 4
    %v150 = vmax.f32 %v148, %v149
    %v151 = vrot.slane %v150, 2
    %v152 = vmax.f32 %v150, %v151
    %v153 = vrot.slane %v152, 1
    %v154 = vmax.f32 %v152, %v153
    %v155 = vsel %vm133, %v28, -inf
    %v156 = vrot.slane %v155, 4
    %v157 = vmax.f32 %v155, %v156
    %v158 = vrot.slane %v157, 2
    %v159 = vmax.f32 %v157, %v158
    %v160 = vrot.slane %v159, 1
    %v161 = vmax.f32 %v159, %v160
    %v162 = vsel %vm133, %v29, -inf
    %v163 = vrot.slane %v162, 4
    %v164 = vmax.f32 %v162, %v163
    %v165 = vrot.slane %v164, 2
    %v166 = vmax.f32 %v164, %v165
    %v167 = vrot.slane %v166, 1
    %v168 = vmax.f32 %v166, %v167
    %v169 = vsel %vm133, %v30, -inf
    %v170 = vrot.slane %v169, 4
    %v171 = vmax.f32 %v169, %v170
    %v172 = vrot.slane %v171, 2
    %v173 = vmax.f32 %v171, %v172
    %v174 = vrot.slane %v173, 1
    %v175 = vmax.f32 %v173, %v174
    %v176 = vsel %vm133, %v31, -inf
    %v177 = vrot.slane %v176, 4
    %v178 = vmax.f32 %v176, %v177
    %v179 = vrot.slane %v178, 2
    %v180 = vmax.f32 %v178, %v179
    %v181 = vrot.slane %v180, 1
    %v182 = vmax.f32 %v180, %v181
    %v183 = vsel %vm133, %v32, -inf
    %v184 = vrot.slane %v183, 4
    %v185 = vmax.f32 %v183, %v184
    %v186 = vrot.slane %v185, 2
    %v187 = vmax.f32 %v185, %v186
    %v188 = vrot.slane %v187, 1
    %v189 = vmax.f32 %v187, %v188
    %v190 = vsel %vm133, %v33, -inf
    %v191 = vrot.slane %v190, 4
    %v192 = vmax.f32 %v190, %v191
    %v193 = vrot.slane %v192, 2
    %v194 = vmax.f32 %v192, %v193
    %v195 = vrot.slane %v194, 1
    %v196 = vmax.f32 %v194, %v195
    %v197 = vsel %vm133, %v34, -inf
    %v198 = vrot.slane %v197, 4
    %v199 = vmax.f32 %v197, %v198
    %v200 = vrot.slane %v199, 2
    %v201 = vmax.f32 %v199, %v200
    %v202 = vrot.slane %v201, 1
    %v203 = vmax.f32 %v201, %v202
    %v204 = vsel %vm133, %v35, -inf
    %v205 = vrot.slane %v204, 4
    %v206 = vmax.f32 %v204, %v205
    %v207 = vrot.slane %v206, 2
    %v208 = vmax.f32 %v206, %v207
    %v209 = vrot.slane %v208, 1
    %v210 = vmax.f32 %v208, %v209
    %v211 = vsel %vm133, %v36, -inf
    %v212 = vrot.slane %v211, 4
    %v213 = vmax.f32 %v211, %v212
    %v214 = vrot.slane %v213, 2
    %v215 = vmax.f32 %v213, %v214
    %v216 = vrot.slane %v215, 1
    %v217 = vmax.f32 %v215, %v216
    %v218 = vsel %vm133, %v37, -inf
    %v219 = vrot.slane %v218, 4
    %v220 = vmax.f32 %v218, %v219
    %v221 = vrot.slane %v220, 2
    %v222 = vmax.f32 %v220, %v221
    %v223 = vrot.slane %v222, 1
    %v224 = vmax.f32 %v222, %v223
    %v225 = vsel %vm133, %v38, -inf
    %v226 = vrot.slane %v225, 4
    %v227 = vmax.f32 %v225, %v226
    %v228 = vrot.slane %v227, 2
    %v229 = vmax.f32 %v227, %v228
    %v230 = vrot.slane %v229, 1
    %v231 = vmax.f32 %v229, %v230
    %v232 = vsel %vm133, %v39, -inf
    %v233 = vrot.slane %v232, 4
    %v234 = vmax.f32 %v232, %v233
    %v235 = vrot.slane %v234, 2
    %v236 = vmax.f32 %v234, %v235
    %v237 = vrot.slane %v236, 1
    %v238 = vmax.f32 %v236, %v237
    %v239 = vsel %vm133, %v40, -inf
    %v240 = vrot.slane %v239, 4
    %v241 = vmax.f32 %v239, %v240
    %v242 = vrot.slane %v241, 2
    %v243 = vmax.f32 %v241, %v242
    %v244 = vrot.slane %v243, 1
    %v245 = vmax.f32 %v243, %v244
    %v246 = vsel %vm133, %v41, -inf
    %v247 = vrot.slane %v246, 4
    %v248 = vmax.f32 %v246, %v247
    %v249 = vrot.slane %v248, 2
    %v250 = vmax.f32 %v248, %v249
    %v251 = vrot.slane %v250, 1
    %v252 = vmax.f32 %v250, %v251
    %v253 = vsel %vm133, %v42, -inf
    %v254 = vrot.slane %v253, 4
    %v255 = vmax.f32 %v253, %v254
    %v256 = vrot.slane %v255, 2
    %v257 = vmax.f32 %v255, %v256
    %v258 = vrot.slane %v257, 1
    %v259 = vmax.f32 %v257, %v258
    %v260 = vsel %vm133, %v43, -inf
    %v261 = vrot.slane %v260, 4
    %v262 = vmax.f32 %v260, %v261
    %v263 = vrot.slane %v262, 2
    %v264 = vmax.f32 %v262, %v263
    %v265 = vrot.slane %v264, 1
    %v266 = vmax.f32 %v264, %v265
    %v267 = vsel %vm133, %v44, -inf
    %v268 = vrot.slane %v267, 4
    %v269 = vmax.f32 %v267, %v268
    %v270 = vrot.slane %v269, 2
    %v271 = vmax.f32 %v269, %v270
    %v272 = vrot.slane %v271, 1
    %v273 = vmax.f32 %v271, %v272
    %v274 = vsel %vm133, %v45, -inf
    %v275 = vrot.slane %v274, 4
    %v276 = vmax.f32 %v274, %v275
    %v277 = vrot.slane %v276, 2
    %v278 = vmax.f32 %v276, %v277
    %v279 = vrot.slane %v278, 1
    %v280 = vmax.f32 %v278, %v279
    %v281 = vsel %vm133, %v46, -inf
    %v282 = vrot.slane %v281, 4
    %v283 = vmax.f32 %v281, %v282
    %v284 = vrot.slane %v283, 2
    %v285 = vmax.f32 %v283, %v284
    %v286 = vrot.slane %v285, 1
    %v287 = vmax.f32 %v285, %v286
    %v288 = vsel %vm133, %v47, -inf
    %v289 = vrot.slane %v288, 4
    %v290 = vmax.f32 %v288, %v289
    %v291 = vrot.slane %v290, 2
    %v292 = vmax.f32 %v290, %v291
    %v293 = vrot.slane %v292, 1
    %v294 = vmax.f32 %v292, %v293
    %v295 = vsel %vm133, %v48, -inf
    %v296 = vrot.slane %v295, 4
    %v297 = vmax.f32 %v295, %v296
    %v298 = vrot.slane %v297, 2
    %v299 = vmax.f32 %v297, %v298
    %v300 = vrot.slane %v299, 1
    %v301 = vmax.f32 %v299, %v300
    %v302 = vsel %vm133, %v49, -inf
    %v303 = vrot.slane %v302, 4
    %v304 = vmax.f32 %v302, %v303
    %v305 = vrot.slane %v304, 2
    %v306 = vmax.f32 %v304, %v305
    %v307 = vrot.slane %v306, 1
    %v308 = vmax.f32 %v306, %v307
    %v309 = vsel %vm133, %v50, -inf
    %v310 = vrot.slane %v309, 4
    %v311 = vmax.f32 %v309, %v310
    %v312 = vrot.slane %v311, 2
    %v313 = vmax.f32 %v311, %v312
    %v314 = vrot.slane %v313, 1
    %v315 = vmax.f32 %v313, %v314
    %v316 = vsel %vm133, %v51, -inf
    %v317 = vrot.slane %v316, 4
    %v318 = vmax.f32 %v316, %v317
    %v319 = vrot.slane %v318, 2
    %v320 = vmax.f32 %v318, %v319
    %v321 = vrot.slane %v320, 1
    %v322 = vmax.f32 %v320, %v321
    %v323 = vsel %vm133, %v52, -inf
    %v324 = vrot.slane %v323, 4
    %v325 = vmax.f32 %v323, %v324
    %v326 = vrot.slane %v325, 2
    %v327 = vmax.f32 %v325, %v326
    %v328 = vrot.slane %v327, 1
    %v329 = vmax.f32 %v327, %v328
    %v330 = vsel %vm133, %v53, -inf
    %v331 = vrot.slane %v330, 4
    %v332 = vmax.f32 %v330, %v331
    %v333 = vrot.slane %v332, 2
    %v334 = vmax.f32 %v332, %v333
    %v335 = vrot.slane %v334, 1
    %v336 = vmax.f32 %v334, %v335
    %v337 = vsel %vm133, %v54, -inf
    %v338 = vrot.slane %v337, 4
    %v339 = vmax.f32 %v337, %v338
    %v340 = vrot.slane %v339, 2
    %v341 = vmax.f32 %v339, %v340
    %v342 = vrot.slane %v341, 1
    %v343 = vmax.f32 %v341, %v342
    %v344 = vsel %vm133, %v55, -inf
    %v345 = vrot.slane %v344, 4
    %v346 = vmax.f32 %v344, %v345
    %v347 = vrot.slane %v346, 2
    %v348 = vmax.f32 %v346, %v347
    %v349 = vrot.slane %v348, 1
    %v350 = vmax.f32 %v348, %v349
    %v351 = vsel %vm133, %v56, -inf
    %v352 = vrot.slane %v351, 4
    %v353 = vmax.f32 %v351, %v352
    %v354 = vrot.slane %v353, 2
    %v355 = vmax.f32 %v353, %v354
    %v356 = vrot.slane %v355, 1
    %v357 = vmax.f32 %v355, %v356
    %v358 = vsel %vm133, %v57, -inf
    %v359 = vrot.slane %v358, 4
    %v360 = vmax.f32 %v358, %v359
    %v361 = vrot.slane %v360, 2
    %v362 = vmax.f32 %v360, %v361
    %v363 = vrot.slane %v362, 1
    %v364 = vmax.f32 %v362, %v363
    %v365 = vsel %vm133, %v58, -inf
    %v366 = vrot.slane %v365, 4
    %v367 = vmax.f32 %v365, %v366
    %v368 = vrot.slane %v367, 2
    %v369 = vmax.f32 %v367, %v368
    %v370 = vrot.slane %v369, 1
    %v371 = vmax.f32 %v369, %v370
    %v372 = vsel %vm133, %v59, -inf
    %v373 = vrot.slane %v372, 4
    %v374 = vmax.f32 %v372, %v373
    %v375 = vrot.slane %v374, 2
    %v376 = vmax.f32 %v374, %v375
    %v377 = vrot.slane %v376, 1
    %v378 = vmax.f32 %v376, %v377
    %v379 = vsel %vm133, %v60, -inf
    %v380 = vrot.slane %v379, 4
    %v381 = vmax.f32 %v379, %v380
    %v382 = vrot.slane %v381, 2
    %v383 = vmax.f32 %v381, %v382
    %v384 = vrot.slane %v383, 1
    %v385 = vmax.f32 %v383, %v384
    %v386 = vsel %vm133, %v61, -inf
    %v387 = vrot.slane %v386, 4
    %v388 = vmax.f32 %v386, %v387
    %v389 = vrot.slane %v388, 2
    %v390 = vmax.f32 %v388, %v389
    %v391 = vrot.slane %v390, 1
    %v392 = vmax.f32 %v390, %v391
    %v393 = vsel %vm133, %v62, -inf
    %v394 = vrot.slane %v393, 4
    %v395 = vmax.f32 %v393, %v394
    %v396 = vrot.slane %v395, 2
    %v397 = vmax.f32 %v395, %v396
    %v398 = vrot.slane %v397, 1
    %v399 = vmax.f32 %v397, %v398
    %v400 = vsel %vm133, %v63, -inf
    %v401 = vrot.slane %v400, 4
    %v402 = vmax.f32 %v400, %v401
    %v403 = vrot.slane %v402, 2
    %v404 = vmax.f32 %v402, %v403
    %v405 = vrot.slane %v404, 1
    %v406 = vmax.f32 %v404, %v405
    %v407 = vsel %vm133, %v64, -inf
    %v408 = vrot.slane %v407, 4
    %v409 = vmax.f32 %v407, %v408
    %v410 = vrot.slane %v409, 2
    %v411 = vmax.f32 %v409, %v410
    %v412 = vrot.slane %v411, 1
    %v413 = vmax.f32 %v411, %v412
    %v414 = vsel %vm133, %v65, -inf
    %v415 = vrot.slane %v414, 4
    %v416 = vmax.f32 %v414, %v415
    %v417 = vrot.slane %v416, 2
    %v418 = vmax.f32 %v416, %v417
    %v419 = vrot.slane %v418, 1
    %v420 = vmax.f32 %v418, %v419
    %v421 = vsel %vm133, %v66, -inf
    %v422 = vrot.slane %v421, 4
    %v423 = vmax.f32 %v421, %v422
    %v424 = vrot.slane %v423, 2
    %v425 = vmax.f32 %v423, %v424
    %v426 = vrot.slane %v425, 1
    %v427 = vmax.f32 %v425, %v426
    %v428 = vsel %vm133, %v67, -inf
    %v429 = vrot.slane %v428, 4
    %v430 = vmax.f32 %v428, %v429
    %v431 = vrot.slane %v430, 2
    %v432 = vmax.f32 %v430, %v431
    %v433 = vrot.slane %v432, 1
    %v434 = vmax.f32 %v432, %v433
    %v435 = vsel %vm133, %v68, -inf
    %v436 = vrot.slane %v435, 4
    %v437 = vmax.f32 %v435, %v436
    %v438 = vrot.slane %v437, 2
    %v439 = vmax.f32 %v437, %v438
    %v440 = vrot.slane %v439, 1
    %v441 = vmax.f32 %v439, %v440
    %v442 = vsel %vm133, %v69, -inf
    %v443 = vrot.slane %v442, 4
    %v444 = vmax.f32 %v442, %v443
    %v445 = vrot.slane %v444, 2
    %v446 = vmax.f32 %v444, %v445
    %v447 = vrot.slane %v446, 1
    %v448 = vmax.f32 %v446, %v447
    %v449 = vsel %vm133, %v70, -inf
    %v450 = vrot.slane %v449, 4
    %v451 = vmax.f32 %v449, %v450
    %v452 = vrot.slane %v451, 2
    %v453 = vmax.f32 %v451, %v452
    %v454 = vrot.slane %v453, 1
    %v455 = vmax.f32 %v453, %v454
    %v456 = vsel %vm133, %v71, -inf
    %v457 = vrot.slane %v456, 4
    %v458 = vmax.f32 %v456, %v457
    %v459 = vrot.slane %v458, 2
    %v460 = vmax.f32 %v458, %v459
    %v461 = vrot.slane %v460, 1
    %v462 = vmax.f32 %v460, %v461
    %v463 = vsel %vm133, %v72, -inf
    %v464 = vrot.slane %v463, 4
    %v465 = vmax.f32 %v463, %v464
    %v466 = vrot.slane %v465, 2
    %v467 = vmax.f32 %v465, %v466
    %v468 = vrot.slane %v467, 1
    %v469 = vmax.f32 %v467, %v468
    %v470 = vsel %vm133, %v73, -inf
    %v471 = vrot.slane %v470, 4
    %v472 = vmax.f32 %v470, %v471
    %v473 = vrot.slane %v472, 2
    %v474 = vmax.f32 %v472, %v473
    %v475 = vrot.slane %v474, 1
    %v476 = vmax.f32 %v474, %v475
    %v477 = vsel %vm133, %v74, -inf
    %v478 = vrot.slane %v477, 4
    %v479 = vmax.f32 %v477, %v478
    %v480 = vrot.slane %v479, 2
    %v481 = vmax.f32 %v479, %v480
    %v482 = vrot.slane %v481, 1
    %v483 = vmax.f32 %v481, %v482
    %v484 = vsel %vm133, %v75, -inf
    %v485 = vrot.slane %v484, 4
    %v486 = vmax.f32 %v484, %v485
    %v487 = vrot.slane %v486, 2
    %v488 = vmax.f32 %v486, %v487
    %v489 = vrot.slane %v488, 1
    %v490 = vmax.f32 %v488, %v489
    %v491 = vsel %vm133, %v76, -inf
    %v492 = vrot.slane %v491, 4
    %v493 = vmax.f32 %v491, %v492
    %v494 = vrot.slane %v493, 2
    %v495 = vmax.f32 %v493, %v494
    %v496 = vrot.slane %v495, 1
    %v497 = vmax.f32 %v495, %v496
    %v498 = vsel %vm133, %v77, -inf
    %v499 = vrot.slane %v498, 4
    %v500 = vmax.f32 %v498, %v499
    %v501 = vrot.slane %v500, 2
    %v502 = vmax.f32 %v500, %v501
    %v503 = vrot.slane %v502, 1
    %v504 = vmax.f32 %v502, %v503
    %v505 = vsel %vm133, %v78, -inf
    %v506 = vrot.slane %v505, 4
    %v507 = vmax.f32 %v505, %v506
    %v508 = vrot.slane %v507, 2
    %v509 = vmax.f32 %v507, %v508
    %v510 = vrot.slane %v509, 1
    %v511 = vmax.f32 %v509, %v510
    %v512 = vsel %vm133, %v79, -inf
    %v513 = vrot.slane %v512, 4
    %v514 = vmax.f32 %v512, %v513
    %v515 = vrot.slane %v514, 2
    %v516 = vmax.f32 %v514, %v515
    %v517 = vrot.slane %v516, 1
    %v518 = vmax.f32 %v516, %v517
    %v519 = vsel %vm133, %v80, -inf
    %v520 = vrot.slane %v519, 4
    %v521 = vmax.f32 %v519, %v520
    %v522 = vrot.slane %v521, 2
    %v523 = vmax.f32 %v521, %v522
    %v524 = vrot.slane %v523, 1
    %v525 = vmax.f32 %v523, %v524
    %v526 = vsel %vm133, %v81, -inf
    %v527 = vrot.slane %v526, 4
    %v528 = vmax.f32 %v526, %v527
    %v529 = vrot.slane %v528, 2
    %v530 = vmax.f32 %v528, %v529
    %v531 = vrot.slane %v530, 1
    %v532 = vmax.f32 %v530, %v531
    %v533 = vsel %vm133, %v82, -inf
    %v534 = vrot.slane %v533, 4
    %v535 = vmax.f32 %v533, %v534
    %v536 = vrot.slane %v535, 2
    %v537 = vmax.f32 %v535, %v536
    %v538 = vrot.slane %v537, 1
    %v539 = vmax.f32 %v537, %v538
    %v540 = vsel %vm133, %v83, -inf
    %v541 = vrot.slane %v540, 4
    %v542 = vmax.f32 %v540, %v541
    %v543 = vrot.slane %v542, 2
    %v544 = vmax.f32 %v542, %v543
    %v545 = vrot.slane %v544, 1
    %v546 = vmax.f32 %v544, %v545
    %v547 = vsel %vm133, %v84, -inf
    %v548 = vrot.slane %v547, 4
    %v549 = vmax.f32 %v547, %v548
    %v550 = vrot.slane %v549, 2
    %v551 = vmax.f32 %v549, %v550
    %v552 = vrot.slane %v551, 1
    %v553 = vmax.f32 %v551, %v552
    %v554 = vsel %vm133, %v85, -inf
    %v555 = vrot.slane %v554, 4
    %v556 = vmax.f32 %v554, %v555
    %v557 = vrot.slane %v556, 2
    %v558 = vmax.f32 %v556, %v557
    %v559 = vrot.slane %v558, 1
    %v560 = vmax.f32 %v558, %v559
    %v561 = vsel %vm133, %v86, -inf
    %v562 = vrot.slane %v561, 4
    %v563 = vmax.f32 %v561, %v562
    %v564 = vrot.slane %v563, 2
    %v565 = vmax.f32 %v563, %v564
    %v566 = vrot.slane %v565, 1
    %v567 = vmax.f32 %v565, %v566
    %v568 = vsel %vm133, %v87, -inf
    %v569 = vrot.slane %v568, 4
    %v570 = vmax.f32 %v568, %v569
    %v571 = vrot.slane %v570, 2
    %v572 = vmax.f32 %v570, %v571
    %v573 = vrot.slane %v572, 1
    %v574 = vmax.f32 %v572, %v573
    %v575 = vsel %vm133, %v88, -inf
    %v576 = vrot.slane %v575, 4
    %v577 = vmax.f32 %v575, %v576
    %v578 = vrot.slane %v577, 2
    %v579 = vmax.f32 %v577, %v578
    %v580 = vrot.slane %v579, 1
    %v581 = vmax.f32 %v579, %v580
    %v582 = vsel %vm133, %v89, -inf
    %v583 = vrot.slane %v582, 4
    %v584 = vmax.f32 %v582, %v583
    %v585 = vrot.slane %v584, 2
    %v586 = vmax.f32 %v584, %v585
    %v587 = vrot.slane %v586, 1
    %v588 = vmax.f32 %v586, %v587
    %v589 = vsel %vm133, %v90, -inf
    %v590 = vrot.slane %v589, 4
    %v591 = vmax.f32 %v589, %v590
    %v592 = vrot.slane %v591, 2
    %v593 = vmax.f32 %v591, %v592
    %v594 = vrot.slane %v593, 1
    %v595 = vmax.f32 %v593, %v594
    %v596 = vsel %vm133, %v91, -inf
    %v597 = vrot.slane %v596, 4
    %v598 = vmax.f32 %v596, %v597
    %v599 = vrot.slane %v598, 2
    %v600 = vmax.f32 %v598, %v599
    %v601 = vrot.slane %v600, 1
    %v602 = vmax.f32 %v600, %v601
    %v603 = vsel %vm133, %v92, -inf
    %v604 = vrot.slane %v603, 4
    %v605 = vmax.f32 %v603, %v604
    %v606 = vrot.slane %v605, 2
    %v607 = vmax.f32 %v605, %v606
    %v608 = vrot.slane %v607, 1
    %v609 = vmax.f32 %v607, %v608
    %v610 = vsel %vm133, %v93, -inf
    %v611 = vrot.slane %v610, 4
    %v612 = vmax.f32 %v610, %v611
    %v613 = vrot.slane %v612, 2
    %v614 = vmax.f32 %v612, %v613
    %v615 = vrot.slane %v614, 1
    %v616 = vmax.f32 %v614, %v615
    %v617 = vsel %vm133, %v94, -inf
    %v618 = vrot.slane %v617, 4
    %v619 = vmax.f32 %v617, %v618
    %v620 = vrot.slane %v619, 2
    %v621 = vmax.f32 %v619, %v620
    %v622 = vrot.slane %v621, 1
    %v623 = vmax.f32 %v621, %v622
    %v624 = vsel %vm133, %v95, -inf
    %v625 = vrot.slane %v624, 4
    %v626 = vmax.f32 %v624, %v625
    %v627 = vrot.slane %v626, 2
    %v628 = vmax.f32 %v626, %v627
    %v629 = vrot.slane %v628, 1
    %v630 = vmax.f32 %v628, %v629
    %v631 = vsel %vm133, %v96, -inf
    %v632 = vrot.slane %v631, 4
    %v633 = vmax.f32 %v631, %v632
    %v634 = vrot.slane %v633, 2
    %v635 = vmax.f32 %v633, %v634
    %v636 = vrot.slane %v635, 1
    %v637 = vmax.f32 %v635, %v636
    %v638 = vsel %vm133, %v97, -inf
    %v639 = vrot.slane %v638, 4
    %v640 = vmax.f32 %v638, %v639
    %v641 = vrot.slane %v640, 2
    %v642 = vmax.f32 %v640, %v641
    %v643 = vrot.slane %v642, 1
    %v644 = vmax.f32 %v642, %v643
    %v645 = vsel %vm133, %v98, -inf
    %v646 = vrot.slane %v645, 4
    %v647 = vmax.f32 %v645, %v646
    %v648 = vrot.slane %v647, 2
    %v649 = vmax.f32 %v647, %v648
    %v650 = vrot.slane %v649, 1
    %v651 = vmax.f32 %v649, %v650
    %v652 = vsel %vm133, %v99, -inf
    %v653 = vrot.slane %v652, 4
    %v654 = vmax.f32 %v652, %v653
    %v655 = vrot.slane %v654, 2
    %v656 = vmax.f32 %v654, %v655
    %v657 = vrot.slane %v656, 1
    %v658 = vmax.f32 %v656, %v657
    %v659 = vsel %vm133, %v100, -inf
    %v660 = vrot.slane %v659, 4
    %v661 = vmax.f32 %v659, %v660
    %v662 = vrot.slane %v661, 2
    %v663 = vmax.f32 %v661, %v662
    %v664 = vrot.slane %v663, 1
    %v665 = vmax.f32 %v663, %v664
    %v666 = vsel %vm133, %v101, -inf
    %v667 = vrot.slane %v666, 4
    %v668 = vmax.f32 %v666, %v667
    %v669 = vrot.slane %v668, 2
    %v670 = vmax.f32 %v668, %v669
    %v671 = vrot.slane %v670, 1
    %v672 = vmax.f32 %v670, %v671
    %v673 = vsel %vm133, %v102, -inf
    %v674 = vrot.slane %v673, 4
    %v675 = vmax.f32 %v673, %v674
    %v676 = vrot.slane %v675, 2
    %v677 = vmax.f32 %v675, %v676
    %v678 = vrot.slane %v677, 1
    %v679 = vmax.f32 %v677, %v678
    %v680 = vsel %vm133, %v103, -inf
    %v681 = vrot.slane %v680, 4
    %v682 = vmax.f32 %v680, %v681
    %v683 = vrot.slane %v682, 2
    %v684 = vmax.f32 %v682, %v683
    %v685 = vrot.slane %v684, 1
    %v686 = vmax.f32 %v684, %v685
    %v687 = vsel %vm133, %v104, -inf
    %v688 = vrot.slane %v687, 4
    %v689 = vmax.f32 %v687, %v688
    %v690 = vrot.slane %v689, 2
    %v691 = vmax.f32 %v689, %v690
    %v692 = vrot.slane %v691, 1
    %v693 = vmax.f32 %v691, %v692
    %v694 = vsel %vm133, %v105, -inf
    %v695 = vrot.slane %v694, 4
    %v696 = vmax.f32 %v694, %v695
    %v697 = vrot.slane %v696, 2
    %v698 = vmax.f32 %v696, %v697
    %v699 = vrot.slane %v698, 1
    %v700 = vmax.f32 %v698, %v699
    %v701 = vsel %vm133, %v106, -inf
    %v702 = vrot.slane %v701, 4
    %v703 = vmax.f32 %v701, %v702
    %v704 = vrot.slane %v703, 2
    %v705 = vmax.f32 %v703, %v704
    %v706 = vrot.slane %v705, 1
    %v707 = vmax.f32 %v705, %v706
    %v708 = vsel %vm133, %v107, -inf
    %v709 = vrot.slane %v708, 4
    %v710 = vmax.f32 %v708, %v709
    %v711 = vrot.slane %v710, 2
    %v712 = vmax.f32 %v710, %v711
    %v713 = vrot.slane %v712, 1
    %v714 = vmax.f32 %v712, %v713
    %v715 = vsel %vm133, %v108, -inf
    %v716 = vrot.slane %v715, 4
    %v717 = vmax.f32 %v715, %v716
    %v718 = vrot.slane %v717, 2
    %v719 = vmax.f32 %v717, %v718
    %v720 = vrot.slane %v719, 1
    %v721 = vmax.f32 %v719, %v720
    %v722 = vsel %vm133, %v109, -inf
    %v723 = vrot.slane %v722, 4
    %v724 = vmax.f32 %v722, %v723
    %v725 = vrot.slane %v724, 2
    %v726 = vmax.f32 %v724, %v725
    %v727 = vrot.slane %v726, 1
    %v728 = vmax.f32 %v726, %v727
    %v729 = vsel %vm133, %v110, -inf
    %v730 = vrot.slane %v729, 4
    %v731 = vmax.f32 %v729, %v730
    %v732 = vrot.slane %v731, 2
    %v733 = vmax.f32 %v731, %v732
    %v734 = vrot.slane %v733, 1
    %v735 = vmax.f32 %v733, %v734
    %v736 = vsel %vm133, %v111, -inf
    %v737 = vrot.slane %v736, 4
    %v738 = vmax.f32 %v736, %v737
    %v739 = vrot.slane %v738, 2
    %v740 = vmax.f32 %v738, %v739
    %v741 = vrot.slane %v740, 1
    %v742 = vmax.f32 %v740, %v741
    %v743 = vsel %vm133, %v112, -inf
    %v744 = vrot.slane %v743, 4
    %v745 = vmax.f32 %v743, %v744
    %v746 = vrot.slane %v745, 2
    %v747 = vmax.f32 %v745, %v746
    %v748 = vrot.slane %v747, 1
    %v749 = vmax.f32 %v747, %v748
    %v750 = vsel %vm133, %v113, -inf
    %v751 = vrot.slane %v750, 4
    %v752 = vmax.f32 %v750, %v751
    %v753 = vrot.slane %v752, 2
    %v754 = vmax.f32 %v752, %v753
    %v755 = vrot.slane %v754, 1
    %v756 = vmax.f32 %v754, %v755
    %v757 = vsel %vm133, %v114, -inf
    %v758 = vrot.slane %v757, 4
    %v759 = vmax.f32 %v757, %v758
    %v760 = vrot.slane %v759, 2
    %v761 = vmax.f32 %v759, %v760
    %v762 = vrot.slane %v761, 1
    %v763 = vmax.f32 %v761, %v762
    %v764 = vsel %vm133, %v115, -inf
    %v765 = vrot.slane %v764, 4
    %v766 = vmax.f32 %v764, %v765
    %v767 = vrot.slane %v766, 2
    %v768 = vmax.f32 %v766, %v767
    %v769 = vrot.slane %v768, 1
    %v770 = vmax.f32 %v768, %v769
    %v771 = vsel %vm133, %v116, -inf
    %v772 = vrot.slane %v771, 4
    %v773 = vmax.f32 %v771, %v772
    %v774 = vrot.slane %v773, 2
    %v775 = vmax.f32 %v773, %v774
    %v776 = vrot.slane %v775, 1
    %v777 = vmax.f32 %v775, %v776
    %v778 = vsel %vm133, %v117, -inf
    %v779 = vrot.slane %v778, 4
    %v780 = vmax.f32 %v778, %v779
    %v781 = vrot.slane %v780, 2
    %v782 = vmax.f32 %v780, %v781
    %v783 = vrot.slane %v782, 1
    %v784 = vmax.f32 %v782, %v783
    %v785 = vsel %vm133, %v118, -inf
    %v786 = vrot.slane %v785, 4
    %v787 = vmax.f32 %v785, %v786
    %v788 = vrot.slane %v787, 2
    %v789 = vmax.f32 %v787, %v788
    %v790 = vrot.slane %v789, 1
    %v791 = vmax.f32 %v789, %v790
    %v792 = vsel %vm133, %v119, -inf
    %v793 = vrot.slane %v792, 4
    %v794 = vmax.f32 %v792, %v793
    %v795 = vrot.slane %v794, 2
    %v796 = vmax.f32 %v794, %v795
    %v797 = vrot.slane %v796, 1
    %v798 = vmax.f32 %v796, %v797
    %v799 = vsel %vm133, %v120, -inf
    %v800 = vrot.slane %v799, 4
    %v801 = vmax.f32 %v799, %v800
    %v802 = vrot.slane %v801, 2
    %v803 = vmax.f32 %v801, %v802
    %v804 = vrot.slane %v803, 1
    %v805 = vmax.f32 %v803, %v804
    %v806 = vsel %vm133, %v121, -inf
    %v807 = vrot.slane %v806, 4
    %v808 = vmax.f32 %v806, %v807
    %v809 = vrot.slane %v808, 2
    %v810 = vmax.f32 %v808, %v809
    %v811 = vrot.slane %v810, 1
    %v812 = vmax.f32 %v810, %v811
    %v813 = vsel %vm133, %v122, -inf
    %v814 = vrot.slane %v813, 4
    %v815 = vmax.f32 %v813, %v814
    %v816 = vrot.slane %v815, 2
    %v817 = vmax.f32 %v815, %v816
    %v818 = vrot.slane %v817, 1
    %v819 = vmax.f32 %v817, %v818
    %v820 = vsel %vm133, %v123, -inf
    %v821 = vrot.slane %v820, 4
    %v822 = vmax.f32 %v820, %v821
    %v823 = vrot.slane %v822, 2
    %v824 = vmax.f32 %v822, %v823
    %v825 = vrot.slane %v824, 1
    %v826 = vmax.f32 %v824, %v825
    %v827 = vsel %vm133, %v124, -inf
    %v828 = vrot.slane %v827, 4
    %v829 = vmax.f32 %v827, %v828
    %v830 = vrot.slane %v829, 2
    %v831 = vmax.f32 %v829, %v830
    %v832 = vrot.slane %v831, 1
    %v833 = vmax.f32 %v831, %v832
    %v834 = vsel %vm133, %v125, -inf
    %v835 = vrot.slane %v834, 4
    %v836 = vmax.f32 %v834, %v835
    %v837 = vrot.slane %v836, 2
    %v838 = vmax.f32 %v836, %v837
    %v839 = vrot.slane %v838, 1
    %v840 = vmax.f32 %v838, %v839
    %v841 = vsel %vm133, %v126, -inf
    %v842 = vrot.slane %v841, 4
    %v843 = vmax.f32 %v841, %v842
    %v844 = vrot.slane %v843, 2
    %v845 = vmax.f32 %v843, %v844
    %v846 = vrot.slane %v845, 1
    %v847 = vmax.f32 %v845, %v846
    %v848 = vsel %vm133, %v127, -inf
    %v849 = vrot.slane %v848, 4
    %v850 = vmax.f32 %v848, %v849
    %v851 = vrot.slane %v850, 2
    %v852 = vmax.f32 %v850, %v851
    %v853 = vrot.slane %v852, 1
    %v854 = vmax.f32 %v852, %v853
    %v855 = vsel %vm133, %v128, -inf
    %v856 = vrot.slane %v855, 4
    %v857 = vmax.f32 %v855, %v856
    %v858 = vrot.slane %v857, 2
    %v859 = vmax.f32 %v857, %v858
    %v860 = vrot.slane %v859, 1
    %v861 = vmax.f32 %v859, %v860
    %v862 = vsel %vm133, %v129, -inf
    %v863 = vrot.slane %v862, 4
    %v864 = vmax.f32 %v862, %v863
    %v865 = vrot.slane %v864, 2
    %v866 = vmax.f32 %v864, %v865
    %v867 = vrot.slane %v866, 1
    %v868 = vmax.f32 %v866, %v867
    %v869 = vsel %vm133, %v130, -inf
    %v870 = vrot.slane %v869, 4
    %v871 = vmax.f32 %v869, %v870
    %v872 = vrot.slane %v871, 2
    %v873 = vmax.f32 %v871, %v872
    %v874 = vrot.slane %v873, 1
    %v875 = vmax.f32 %v873, %v874
    %v876 = vsel %vm133, %v131, -inf
    %v877 = vrot.slane %v876, 4
    %v878 = vmax.f32 %v876, %v877
    %v879 = vrot.slane %v878, 2
    %v880 = vmax.f32 %v878, %v879
    %v881 = vrot.slane %v880, 1
    %v882 = vmax.f32 %v880, %v881
    %v883 = vsel %vm133, %v132, -inf
    %v884 = vrot.slane %v883, 4
    %v885 = vmax.f32 %v883, %v884
    %v886 = vrot.slane %v885, 2
    %v887 = vmax.f32 %v885, %v886
    %v888 = vrot.slane %v887, 1
    %v889 = vmax.f32 %v887, %v888
    %v890 = vmax.f32 %v140, %v182
    %v891 = vmax.f32 %v890, %v224
    %v892 = vmax.f32 %v147, %v189
    %v893 = vmax.f32 %v892, %v231
    %v894 = vmax.f32 %v154, %v196
    %v895 = vmax.f32 %v894, %v238
    %v896 = vmax.f32 %v161, %v203
    %v897 = vmax.f32 %v896, %v245
    %v898 = vmax.f32 %v168, %v210
    %v899 = vmax.f32 %v898, %v252
    %v900 = vmax.f32 %v175, %v217
    %v901 = vmax.f32 %v900, %v259
    %v902 = vmax.f32 %v266, %v308
    %v903 = vmax.f32 %v902, %v350
    %v904 = vmax.f32 %v273, %v315
    %v905 = vmax.f32 %v904, %v357
    %v906 = vmax.f32 %v280, %v322
    %v907 = vmax.f32 %v906, %v364
    %v908 = vmax.f32 %v287, %v329
    %v909 = vmax.f32 %v908, %v371
    %v910 = vmax.f32 %v294, %v336
    %v911 = vmax.f32 %v910, %v378
    %v912 = vmax.f32 %v301, %v343
    %v913 = vmax.f32 %v912, %v385
    %v914 = vmax.f32 %v392, %v434
    %v915 = vmax.f32 %v914, %v476
    %v916 = vmax.f32 %v399, %v441
    %v917 = vmax.f32 %v916, %v483
    %v918 = vmax.f32 %v406, %v448
    %v919 = vmax.f32 %v918, %v490
    %v920 = vmax.f32 %v413, %v455
    %v921 = vmax.f32 %v920, %v497
    %v922 = vmax.f32 %v420, %v462
    %v923 = vmax.f32 %v922, %v504
    %v924 = vmax.f32 %v427, %v469
    %v925 = vmax.f32 %v924, %v511
    %v926 = vmax.f32 %v518, %v560
    %v927 = vmax.f32 %v926, %v602
    %v928 = vmax.f32 %v525, %v567
    %v929 = vmax.f32 %v928, %v609
    %v930 = vmax.f32 %v532, %v574
    %v931 = vmax.f32 %v930, %v616
    %v932 = vmax.f32 %v539, %v581
    %v933 = vmax.f32 %v932, %v623
    %v934 = vmax.f32 %v546, %v588
    %v935 = vmax.f32 %v934, %v630
    %v936 = vmax.f32 %v553, %v595
    %v937 = vmax.f32 %v936, %v637
    %v938 = vmax.f32 %v644, %v686
    %v939 = vmax.f32 %v938, %v728
    %v940 = vmax.f32 %v651, %v693
    %v941 = vmax.f32 %v940, %v735
    %v942 = vmax.f32 %v658, %v700
    %v943 = vmax.f32 %v942, %v742
    %v944 = vmax.f32 %v665, %v707
    %v945 = vmax.f32 %v944, %v749
    %v946 = vmax.f32 %v672, %v714
    %v947 = vmax.f32 %v946, %v756
    %v948 = vmax.f32 %v679, %v721
    %v949 = vmax.f32 %v948, %v763
    %v950 = vmax.f32 %v770, %v812
    %v951 = vmax.f32 %v950, %v854
    %v952 = vmax.f32 %v777, %v819
    %v953 = vmax.f32 %v952, %v861
    %v954 = vmax.f32 %v784, %v826
    %v955 = vmax.f32 %v954, %v868
    %v956 = vmax.f32 %v791, %v833
    %v957 = vmax.f32 %v956, %v875
    %v958 = vmax.f32 %v798, %v840
    %v959 = vmax.f32 %v958, %v882
    %v960 = vmax.f32 %v805, %v847
    %v961 = vmax.f32 %v960, %v889
    %vm998 = vcmask 1041409
    %v999 = vsel %vm998, %v893, %v891
    %vm1000 = vcmask 1042434
    %v1001 = vsel %vm1000, %v895, %v999
    %vm1002 = vcmask 1043459
    %v1003 = vsel %vm1002, %v897, %v1001
    %vm1004 = vcmask 1044484
    %v1005 = vsel %vm1004, %v899, %v1003
    %vm1006 = vcmask 1045509
    %v1007 = vsel %vm1006, %v901, %v1005
    %v1008 = vsel %vm998, %v905, %v903
    %v1009 = vsel %vm1000, %v907, %v1008
    %v1010 = vsel %vm1002, %v909, %v1009
    %v1011 = vsel %vm1004, %v911, %v1010
    %v1012 = vsel %vm1006, %v913, %v1011
    %v1013 = vsel %vm998, %v917, %v915
    %v1014 = vsel %vm1000, %v919, %v1013
    %v1015 = vsel %vm1002, %v921, %v1014
    %v1016 = vsel %vm1004, %v923, %v1015
    %v1017 = vsel %vm1006, %v925, %v1016
    %v1018 = vsel %vm998, %v929, %v927
    %v1019 = vsel %vm1000, %v931, %v1018
    %v1020 = vsel %vm1002, %v933, %v1019
    %v1021 = vsel %vm1004, %v935, %v1020
    %v1022 = vsel %vm1006, %v937, %v1021
    %v1023 = vsel %vm998, %v941, %v939
    %v1024 = vsel %vm1000, %v943, %v1023
    %v1025 = vsel %vm1002, %v945, %v1024
    %v1026 = vsel %vm1004, %v947, %v1025
    %v1027 = vsel %vm1006, %v949, %v1026
    %v1028 = vsel %vm998, %v953, %v951
    %v1029 = vsel %vm1000, %v955, %v1028
    %v1030 = vsel %vm1002, %v957, %v1029
    %v1031 = vsel %vm1004, %v959, %v1030
    %v1032 = vsel %vm1006, %v961, %v1031
    %1039 = vst [vmem:[#allocation5] sm:$0x3f] %v1007
    %1040 = vst [vmem:[#allocation5 + $0x8] sm:$0x3f] %v1012
    %1041 = vst [vmem:[#allocation5 + $0x10] sm:$0x3f] %v1017
    %1042 = vst [vmem:[#allocation5 + $0x18] sm:$0x3f] %v1022
    %1043 = vst [vmem:[#allocation5 + $0x20] sm:$0x3f] %v1027
    %1044 = vst [vmem:[#allocation5 + $0x28] sm:$0x3f] %v1032
    // Predicated region
    $region10: #{tpu_custom_call.1} parent=1 // pred_check
      _
    $region11: #{tpu_custom_call.1} parent=1 // pred_check_branch
      %1046 = sbr.rel (0) target = $region13
    $region12: #{tpu_custom_call.1} parent=1 // pred_region
      %1048 = vsyncadd [#allocation4], 0
      %s1049 = sshll.u32 [#allocation5], 4
      %s1050 = int_to_ptr.vmem [resolvable:$true] %s1049
      %s1051 = sshll.u32 %s1, 4
      %s1052 = int_to_ptr.hbm [resolvable:$true] %s1051
      %1057 = dma.vmem_to_hbm [thread:$0]  %s1050, 768, %s1052, [#allocation4], 128, 128, 8
    $region13: #{tpu_custom_call.1} parent=1 // pred_fallthru
      _
    // Predicated region
    $region14: #{tpu_custom_call.1} parent=1 // pred_check
      _
    $region15: #{tpu_custom_call.1} parent=1 // pred_check_branch
      %1059 = sbr.rel (0) target = $region17
    $region16: #{tpu_custom_call.1} parent=1 // pred_region
      %1061 = dma.done [#allocation4], 768
    $region17: #{tpu_custom_call.1} parent=1 // pred_fallthru
      _
    %1062 = vsyncpa [#allocation3], 1
    %1063 = vsyncpa [#allocation4], 1

</llo_original>
